<compile_context>
chip_gen: v7x
topology: tpu7x:2x2x1
jax: 0.10.0
libtpu: 0.0.40
codegen_flags: <defaults>
</compile_context>

<pallas_src>
import jax
import jax.numpy as jnp
from jax.experimental import pallas as pl
from jax.experimental.pallas import tpu as pltpu

EPS = 1e-5


# ---------------------------------------------------------------------------
# Hardware queries (trace-time; safe fallbacks if unavailable)
# ---------------------------------------------------------------------------

def _vmem_capacity_bytes():
    try:
        return int(pltpu.get_tpu_info().vmem_capacity_bytes)
    except Exception:
        return 64 << 20          # conservative: v7x per-TensorCore VMEM


def _has_bf16_vpu():
    """v6e/v7x have a bf16 VPU; v5e does not (keep f32 elementwise there)."""
    try:
        kind = jax.devices()[0].device_kind.lower()
        return not ("v5 lite" in kind or "v5lite" in kind or "v5e" in kind)
    except Exception:
        return True


# ---------------------------------------------------------------------------
# Kernels
# ---------------------------------------------------------------------------

def _make_ln_kernel(has_bias, affine_dtype):
    lowp = affine_dtype != jnp.float32

    def _normalize(x_ref):
        x = x_ref[...]                                  # (tile_rows, D)
        x32 = x.astype(jnp.float32)
        mean = jnp.mean(x32, axis=-1, keepdims=True)
        mean_sq = jnp.mean(x32 * x32, axis=-1, keepdims=True)
        # One-pass variance (f32 accumulation); clamp guards tiny negatives.
        # NOTE: can lose precision vs the two-pass (x-mean)^2 form for
        # ill-conditioned f32 inputs; fine for typical activations.
        var = jnp.maximum(mean_sq - mean * mean, 0.0)
        inv = jax.lax.rsqrt(var + EPS)
        if lowp:
            # Stats were accumulated in f32; do the elementwise tail in the
            # packed low-precision dtype (2x elements per vreg on v6e/v7x).
            return (x - mean.astype(affine_dtype)) * inv.astype(affine_dtype)
        return (x32 - mean) * inv

    if has_bias:
        def kernel(x_ref, w_ref, b_ref, o_ref):
            xhat = _normalize(x_ref)
            o_ref[...] = (xhat * w_ref[...] + b_ref[...]).astype(o_ref.dtype)
    else:
        def kernel(x_ref, w_ref, o_ref):
            xhat = _normalize(x_ref)
            o_ref[...] = (xhat * w_ref[...]).astype(o_ref.dtype)
    return kernel


# ---------------------------------------------------------------------------
# Tile selection
# ---------------------------------------------------------------------------

def _pick_tile_rows(R, D, dtype, vmem_cap):
    """Pick a row tile: as large as the VMEM budget allows, but never so large
    that the grid degenerates to ~1 step (which kills pipelining and idles one
    v7x TensorCore)."""
    db = jnp.dtype(dtype).itemsize
    row_align = {4: 8, 2: 16, 1: 32}.get(db, 8)          # sublane packing
    Dp = pl.cdiv(D, 128) * 128                           # lane-padded width

    # Per-row VMEM cost: 2x double-buffered input blocks + 2x output blocks in
    # x.dtype, plus ~2 full-tile f32 intermediates (the astype(f32) copy of x
    # and one elementwise temp) that live in VMEM once they exceed 64 vregs.
    per_row = 4 * Dp * db + 2 * Dp * 4

    # Generation-aware block budget: ~half of physical per-core VMEM
    # (32 MiB on v7x, 64 MiB on v5e/v6e).
    budget = max(8 << 20, vmem_cap // 2)
    cap = max(row_align, budget // per_row)

    max_rows = 2048 if vmem_cap >= (96 << 20) else 1024
    cap = min(cap, max_rows)

    # Guarantee >= ~8 grid steps when R is large enough, so the BlockSpec
    # pipeline overlaps DMA with compute and dual-TC sharding has work.
    min_steps = 8
    if R >= min_steps * row_align:
        depth_cap = pl.cdiv(pl.cdiv(R, min_steps), row_align) * row_align
        cap = max(row_align, min(cap, depth_cap))

    # Round to a packing-friendly multiple.
    if cap >= 32:
        cap = (cap // 32) * 32
    else:
        cap = max(row_align, (cap // row_align) * row_align)

    if R <= cap:
        return max(row_align, pl.cdiv(R, row_align) * row_align)
    return cap


# ---------------------------------------------------------------------------
# Wrapper
# ---------------------------------------------------------------------------

def layer_norm(x, weight, bias=None, *, tile_rows=None):
    """LayerNorm over the last dim of x, matching F.layer_norm(..., eps=1e-5)."""
    orig_shape = x.shape
    D = orig_shape[-1]
    x2 = x.reshape(-1, D)
    R = x2.shape[0]
    db = x2.dtype.itemsize

    vmem_cap = _vmem_capacity_bytes()
    if tile_rows is None:
        tile_rows = _pick_tile_rows(R, D, x2.dtype, vmem_cap)

    # Compute dtype for the normalize+affine tail (stats always accumulate f32).
    affine_dtype = jnp.float32
    if x2.dtype == jnp.bfloat16 and _has_bf16_vpu():
        affine_dtype = jnp.bfloat16
    pdb = jnp.dtype(affine_dtype).itemsize

    grid = (pl.cdiv(R, tile_rows),)                      # ragged last block OK

    w2 = weight.astype(affine_dtype).reshape(1, D)       # cast once, VMEM-resident
    operands = [x2, w2]
    in_specs = [
        pl.BlockSpec((tile_rows, D), lambda i: (i, 0)),
        pl.BlockSpec((1, D), lambda i: (0, 0)),
    ]
    if bias is not None:
        operands.append(bias.astype(affine_dtype).reshape(1, D))
        in_specs.append(pl.BlockSpec((1, D), lambda i: (0, 0)))
    kernel = _make_ln_kernel(bias is not None, affine_dtype)

    # VMEM budget: double-buffered in + out blocks, full-tile f32 working set,
    # resident params, plus headroom for Mosaic internal scratch; capped at 3/4
    # of physical VMEM (48 MiB on v7x, 96 MiB on v5e/v6e).
    Dp = pl.cdiv(D, 128) * 128
    block_bytes = 4 * tile_rows * Dp * db                # 2 in-bufs + 2 out-bufs
    work_bytes = 2 * tile_rows * Dp * 4                  # f32 x copy + one temp
    param_bytes = 2 * 2 * Dp * pdb
    vmem_limit = int(min(
        max(block_bytes + work_bytes + param_bytes + (8 << 20), 16 << 20),
        (vmem_cap * 3) // 4,
    ))

    cost = pl.CostEstimate(
        flops=int(7 * R * D),
        transcendentals=int(R),
        bytes_accessed=int(2 * R * D * db + 2 * D * pdb),
    )

    out = pl.pallas_call(
        kernel,
        out_shape=jax.ShapeDtypeStruct((R, D), x.dtype),
        grid_spec=pltpu.PrefetchScalarGridSpec(
            num_scalar_prefetch=0,
            grid=grid,
            in_specs=in_specs,
            out_specs=pl.BlockSpec((tile_rows, D), lambda i: (i, 0)),
        ),
        compiler_params=pltpu.CompilerParams(
            dimension_semantics=("parallel",),           # shard rows across v7x TCs
            vmem_limit_bytes=vmem_limit,
        ),
        cost_estimate=cost,
    )(*operands)

    return out.reshape(orig_shape)


# ---------------------------------------------------------------------------
# Demo / self-test
# ---------------------------------------------------------------------------

if __name__ == "__main__":
    key = jax.random.PRNGKey(0)
    B, T, D = 2, 8, 32

    x = jax.random.normal(key, (B, T, D), dtype=jnp.float32)

    # Deterministic params matching nn.Parameter(torch.ones/zeros(ndim)).
    weight = jnp.ones((D,), dtype=jnp.float32)
    bias = jnp.zeros((D,), dtype=jnp.float32)   # module built with bias=True

    # Reference (plain JAX), matching F.layer_norm(eps=1e-5) semantics.
    mean = jnp.mean(x, axis=-1, keepdims=True)
    var = jnp.mean((x - mean) ** 2, axis=-1, keepdims=True)
    xhat = (x - mean) * jax.lax.rsqrt(var + EPS)

    # bias=True path
    y = jax.block_until_ready(layer_norm(x, weight, bias))
    ref = xhat * weight + bias
    assert jnp.allclose(y, ref, atol=1e-5, rtol=1e-5), "mismatch vs reference (bias)"

    # bias=False path (dedicated kernel variant, no zero vector)
    y_nb = jax.block_until_ready(layer_norm(x, weight, None))
    ref_nb = xhat * weight
    assert jnp.allclose(y_nb, ref_nb, atol=1e-5, rtol=1e-5), "mismatch vs reference (no bias)"

    print("KERNEL_OK")
</pallas_src>

<mosaic_0001>
module attributes {stable_mosaic.version = 11 : i64} {
  func.func @kernel(%arg0: i32, %arg1: memref<16x32xf32, #tpu.memory_space<vmem>>, %arg2: memref<1x32xf32, #tpu.memory_space<vmem>>, %arg3: memref<1x32xf32, #tpu.memory_space<vmem>>, %arg4: memref<16x32xf32, #tpu.memory_space<vmem>>) attributes {dimension_semantics = [#tpu.dimension_semantics<parallel>], iteration_bounds = array<i64: 1>, scalar_prefetch = 0 : i64, scratch_operands = 0 : i64, tpu.core_type = #tpu.core_type<tc>, window_params = [{transform_indices = @transform_0, window_bounds = array<i64: 16, 32>}, {pipeline_mode = #tpu.pipeline_mode<synchronous>, transform_indices = @transform_1, window_bounds = array<i64: 1, 32>}, {pipeline_mode = #tpu.pipeline_mode<synchronous>, transform_indices = @transform_2, window_bounds = array<i64: 1, 32>}, {transform_indices = @transform_3, window_bounds = array<i64: 16, 32>}]} {
    %c0 = arith.constant 0 : index
    %c0_0 = arith.constant 0 : index
    %0 = vector.load %arg1[%c0, %c0_0] : memref<16x32xf32, #tpu.memory_space<vmem>>, vector<16x32xf32>
    %cst = arith.constant dense<0.000000e+00> : vector<16xf32>
    %1 = vector.multi_reduction <add>, %0, %cst [1] : vector<16x32xf32> to vector<16xf32>
    %2 = vector.shape_cast %1 : vector<16xf32> to vector<16x1xf32>
    %cst_1 = arith.constant 3.200000e+01 : f32
    %3 = vector.broadcast %cst_1 : f32 to vector<16x1xf32>
    %4 = arith.divf %2, %3 : vector<16x1xf32>
    %5 = arith.mulf %0, %0 : vector<16x32xf32>
    %cst_2 = arith.constant dense<0.000000e+00> : vector<16xf32>
    %6 = vector.multi_reduction <add>, %5, %cst_2 [1] : vector<16x32xf32> to vector<16xf32>
    %7 = vector.shape_cast %6 : vector<16xf32> to vector<16x1xf32>
    %cst_3 = arith.constant 3.200000e+01 : f32
    %8 = vector.broadcast %cst_3 : f32 to vector<16x1xf32>
    %9 = arith.divf %7, %8 : vector<16x1xf32>
    %10 = arith.mulf %4, %4 : vector<16x1xf32>
    %11 = arith.subf %9, %10 : vector<16x1xf32>
    %cst_4 = arith.constant 0.000000e+00 : f32
    %12 = vector.broadcast %cst_4 : f32 to vector<16x1xf32>
    %13 = arith.maximumf %11, %12 : vector<16x1xf32>
    %cst_5 = arith.constant 9.99999974E-6 : f32
    %14 = vector.broadcast %cst_5 : f32 to vector<16x1xf32>
    %15 = arith.addf %13, %14 : vector<16x1xf32>
    %16 = math.rsqrt %15 : vector<16x1xf32>
    %17 = vector.broadcast %4 : vector<16x1xf32> to vector<16x32xf32>
    %18 = arith.subf %0, %17 : vector<16x32xf32>
    %19 = vector.broadcast %16 : vector<16x1xf32> to vector<16x32xf32>
    %20 = arith.mulf %18, %19 : vector<16x32xf32>
    %c0_6 = arith.constant 0 : index
    %c0_7 = arith.constant 0 : index
    %21 = vector.load %arg2[%c0_6, %c0_7] : memref<1x32xf32, #tpu.memory_space<vmem>>, vector<1x32xf32>
    %22 = vector.broadcast %21 : vector<1x32xf32> to vector<16x32xf32>
    %23 = arith.mulf %20, %22 : vector<16x32xf32>
    %c0_8 = arith.constant 0 : index
    %c0_9 = arith.constant 0 : index
    %24 = vector.load %arg3[%c0_8, %c0_9] : memref<1x32xf32, #tpu.memory_space<vmem>>, vector<1x32xf32>
    %25 = vector.broadcast %24 : vector<1x32xf32> to vector<16x32xf32>
    %26 = arith.addf %23, %25 : vector<16x32xf32>
    %c0_10 = arith.constant 0 : index
    %c0_11 = arith.constant 0 : index
    %27 = vector.load %arg4[%c0_10, %c0_11] : memref<16x32xf32, #tpu.memory_space<vmem>>, vector<16x32xf32>
    tpu.vector_store %arg4[%c0_10, %c0_11], %26 {strides = array<i32>} : memref<16x32xf32, #tpu.memory_space<vmem>>, vector<16x32xf32>,
    return
  }
  func.func @transform_0(%arg0: i32) -> (i32, i32) {
    %c0_i32 = arith.constant 0 : i32
    %c0_i32_0 = arith.constant 0 : i32
    return %arg0, %c0_i32 : i32, i32
  }
  func.func @transform_1(%arg0: i32) -> (i32, i32) {
    %c0_i32 = arith.constant 0 : i32
    %c0_i32_0 = arith.constant 0 : i32
    %c0_i32_1 = arith.constant 0 : i32
    return %c0_i32, %c0_i32_0 : i32, i32
  }
  func.func @transform_2(%arg0: i32) -> (i32, i32) {
    %c0_i32 = arith.constant 0 : i32
    %c0_i32_0 = arith.constant 0 : i32
    %c0_i32_1 = arith.constant 0 : i32
    return %c0_i32, %c0_i32_0 : i32, i32
  }
  func.func @transform_3(%arg0: i32) -> (i32, i32) {
    %c0_i32 = arith.constant 0 : i32
    %c0_i32_0 = arith.constant 0 : i32
    return %arg0, %c0_i32 : i32, i32
  }
}

</mosaic_0001>

<llo_original>
// kernel: tpu_custom_call.1
$region0: #{tpu_custom_call.1}
  #allocation0 [shape = 'u32[]', space=smem, size = 0x4, offset = 0x4, fixed_abs, tag = 'smem constant byte address 0x4 - core index']
  #allocation1 [shape = 'u32[144,128]{1,0:T(1,128)}', space=vmem, size = 0x12000, scoped, tag = 'internal scratch']
  %s0 = inlined_call_operand.hbm [shape: f32[16,32], index: 0, kind: input, shape index: {}]
  %s1 = inlined_call_operand.vmem [shape: f32[1,32], index: 1, kind: input, shape index: {}]
  %s2 = inlined_call_operand.vmem [shape: f32[1,32], index: 2, kind: input, shape index: {}]
  %s3 = inlined_call_operand.hbm [shape: f32[16,32], index: 3, kind: output, shape index: {}]
  %s4 = sld [smem:[#allocation0]]
  $region26: #{tpu_custom_call.1} parent=0
    _
  %s6 = ssub.s32 1, %s4
  %s7 = scalar_select 0, %s6, %s4
  $region1: #{tpu_custom_call.1} parent=0
    #allocation2 [shape = 'u8[8192]{0}', space=vmem, size = 0x2000, scoped, tag = 'input window, operand 0, single buffered']
    #allocation3 [shape = 's32[1]{0}', space=sflag, size = 0x4, scoped, tag = 'scoped memory for tpu_custom_call.1']
    #allocation4 [shape = 's32[1]{0}', space=sflag, size = 0x4, scoped, tag = 'scoped memory for tpu_custom_call.1']
    #allocation5 [shape = 'u8[8192]{0}', space=vmem, size = 0x2000, scoped, tag = 'output window, operand 0, single buffered']
    %8 = vsyncpa [#allocation3], 0
    %9 = vsyncpa [#allocation4], 0
    // Predicated region
    $region2: #{tpu_custom_call.1} parent=1 // pred_check
      _
    $region3: #{tpu_custom_call.1} parent=1 // pred_check_branch
      %11 = sbr.rel (0) target = $region5
    $region4: #{tpu_custom_call.1} parent=1 // pred_region
      %s13 = ssub.s32 256, 256
      %14 = vsyncadd [#allocation3], %s13
      %s15 = sshll.u32 [#allocation2], 4
      %s16 = int_to_ptr.vmem [resolvable:$true] %s15
      %21 = dma.hbm_to_vmem [thread:$0]  %s0, 256, %s16, [#allocation3], 128, 128, 8
    $region5: #{tpu_custom_call.1} parent=1 // pred_fallthru
      _
    // Predicated region
    $region6: #{tpu_custom_call.1} parent=1 // pred_check
      _
    $region7: #{tpu_custom_call.1} parent=1 // pred_check_branch
      %23 = sbr.rel (0) target = $region9
    $region8: #{tpu_custom_call.1} parent=1 // pred_region
      _
    $region9: #{tpu_custom_call.1} parent=1 // pred_fallthru
      _
    // Predicated region
    $region10: #{tpu_custom_call.1} parent=1 // pred_check
      _
    $region11: #{tpu_custom_call.1} parent=1 // pred_check_branch
      %25 = sbr.rel (0) target = $region13
    $region12: #{tpu_custom_call.1} parent=1 // pred_region
      _
    $region13: #{tpu_custom_call.1} parent=1 // pred_fallthru
      _
    // Predicated region
    $region14: #{tpu_custom_call.1} parent=1 // pred_check
      _
    $region15: #{tpu_custom_call.1} parent=1 // pred_check_branch
      %27 = sbr.rel (0) target = $region17
    $region16: #{tpu_custom_call.1} parent=1 // pred_region
      %28 = dma.done [#allocation3], 256
    $region17: #{tpu_custom_call.1} parent=1 // pred_fallthru
      _
    %v29 = vld [vmem:[#allocation2] sm:$0xff]
    %v30 = vld [vmem:[#allocation2 + $0x8] sm:$0xff]
    %vm31 = vcmask 261120
    %v32 = vsel %vm31, %v29, 0.0
    %33 = vadd.xlane.f32.xlu0 %v32
    %v34 = vpop.xlane.xlu0 %33
    %v35 = vsel %vm31, %v30, 0.0
    %36 = vadd.xlane.f32.xlu0 %v35
    %v37 = vpop.xlane.xlu0 %36
    %v38 = vrcp.pop 32.0
    %v39 = vmul.f32 %v34, %v38
    %v40 = vmul.f32 %v37, %v38
    %v41 = vmul.f32 %v29, %v29
    %v42 = vmul.f32 %v30, %v30
    %v43 = vsel %vm31, %v41, 0.0
    %44 = vadd.xlane.f32.xlu0 %v43
    %v45 = vpop.xlane.xlu0 %44
    %v46 = vsel %vm31, %v42, 0.0
    %47 = vadd.xlane.f32.xlu0 %v46
    %v48 = vpop.xlane.xlu0 %47
    %v49 = vmul.f32 %v45, %v38
    %v50 = vmul.f32 %v48, %v38
    %v51 = vmul.f32 %v39, %v39
    %v52 = vmul.f32 %v40, %v40
    %v53 = vsub.f32 %v49, %v51
    %v54 = vsub.f32 %v50, %v52
    %v55 = vmax.f32 %v53, 0.0
    %v56 = vmax.f32 %v54, 0.0
    %v57 = vadd.f32 %v55, 1e-05
    %v58 = vadd.f32 %v56, 1e-05
    %v59 = vrsqrt.pop %v57
    %v60 = vrsqrt.pop %v58
    %v61 = vsub.f32 %v29, %v39
    %v62 = vsub.f32 %v30, %v40
    %v63 = vmul.f32 %v61, %v59
    %v64 = vmul.f32 %v62, %v60
    %v65 = vld [vmem:[%s1] sm:$0x1]
    %v67 = vlaneseq
    %v68 = vshrl.u32 %v67, 7
    %v69 = vsub.s32 0, %v68
    %v70 = vrot.slane %v65, %v69
    %v72 = vmul.f32 %v63, %v70
    %v73 = vmul.f32 %v64, %v70
    %v74 = vld [vmem:[%s2] sm:$0x1]
    %v76 = vlaneseq
    %v77 = vshrl.u32 %v76, 7
    %v78 = vsub.s32 0, %v77
    %v79 = vrot.slane %v74, %v78
    %v81 = vadd.f32 %v72, %v79
    %v82 = vadd.f32 %v73, %v79
    %83 = vst.msk [vmem:[#allocation5] sm:$0xff] %vm31, %v81
    %84 = vst.msk [vmem:[#allocation5 + $0x8] sm:$0xff] %vm31, %v82
    // Predicated region
    $region18: #{tpu_custom_call.1} parent=1 // pred_check
      _
    $region19: #{tpu_custom_call.1} parent=1 // pred_check_branch
      %86 = sbr.rel (0) target = $region21
    $region20: #{tpu_custom_call.1} parent=1 // pred_region
      %s88 = ssub.s32 256, 256
      %89 = vsyncadd [#allocation4], %s88
      %s90 = sshll.u32 [#allocation5], 4
      %s91 = int_to_ptr.vmem [resolvable:$true] %s90
      %96 = dma.vmem_to_hbm [thread:$0]  %s91, 256, %s3, [#allocation4], 128, 128, 8
    $region21: #{tpu_custom_call.1} parent=1 // pred_fallthru
      _
    // Predicated region
    $region22: #{tpu_custom_call.1} parent=1 // pred_check
      _
    $region23: #{tpu_custom_call.1} parent=1 // pred_check_branch
      %98 = sbr.rel (0) target = $region25
    $region24: #{tpu_custom_call.1} parent=1 // pred_region
      %99 = dma.done [#allocation4], 256
    $region25: #{tpu_custom_call.1} parent=1 // pred_fallthru
      _
    %100 = vsyncpa [#allocation3], 1
    %101 = vsyncpa [#allocation4], 1

</llo_original>
